<compile_context>
chip_gen: v7x
topology: tpu7x:2x2x1
jax: 0.10.0
libtpu: 0.0.40
codegen_flags: <defaults>
</compile_context>

<pallas_src>
import functools

import jax
import jax.numpy as jnp
from jax.experimental import pallas as pl
from jax.experimental.pallas import tpu as pltpu


def _round_up(n, m):
    return ((n + m - 1) // m) * m


def mlp_kernel(x_ref, w1_ref, b1_ref, w2_ref, b2_ref, w3_ref, b3_ref, o_ref):
    """Fused 3-layer MLP: two ReLU hidden layers + linear head.

    x/W operands are bf16 (MXU-friendly); accumulation, bias-add and ReLU are
    f32; hidden activations are cast back to bf16 before the next matmul.
    """
    # Layer 1: (bm, F) @ (F, H1) -> f32 accum, bias + ReLU in f32.
    h1 = jnp.dot(x_ref[...], w1_ref[...], preferred_element_type=jnp.float32)
    h1 = jnp.maximum(h1 + b1_ref[...], 0.0)                 # ReLU (smooth=False)

    # Layer 2: (bm, H1) @ (H1, H2)
    h2 = jnp.dot(h1.astype(w2_ref.dtype), w2_ref[...],
                 preferred_element_type=jnp.float32)
    h2 = jnp.maximum(h2 + b2_ref[...], 0.0)                 # ReLU

    # TODO(synk): F.dropout(training=True) path not implemented; eval-mode dropout is identity.

    # Head: (bm, H2) @ (H2, C)
    logits = jnp.dot(h2.astype(w3_ref.dtype), w3_ref[...],
                     preferred_element_type=jnp.float32) + b3_ref[...]
    o_ref[...] = logits.astype(o_ref.dtype)


def md_dnn_forward(x, params, *, bm_max=512, compute_dtype=jnp.bfloat16):
    """Runs the fused MLP kernel, tiling over the (padded) batch dimension.

    Pads batch to a multiple of the chosen batch tile and all lane dims to
    multiples of 128, then slices the real logits back out.
    """
    w1, b1, w2, b2, w3, b3 = params
    B, F = x.shape
    H1 = w1.shape[1]
    H2 = w2.shape[1]
    C = w3.shape[1]

    # Lane padding (zero pad -> numerically inert for the real rows/cols).
    F_p = _round_up(F, 128)
    H1_p = _round_up(H1, 128)
    H2_p = _round_up(H2, 128)
    C_p = _round_up(C, 128)

    # Adaptive batch tile: big tiles for big batches, no 512-row padding for
    # tiny ones.  Keep it a multiple of 128 so the MXU LHS is full-height.
    bm = min(bm_max, _round_up(B, 128))
    B_p = _round_up(B, bm)

    def pad2(a, rows, cols):
        return jnp.pad(a, ((0, rows - a.shape[0]), (0, cols - a.shape[1])))

    x_p = pad2(x, B_p, F_p).astype(compute_dtype)
    w1_p = pad2(w1, F_p, H1_p).astype(compute_dtype)
    w2_p = pad2(w2, H1_p, H2_p).astype(compute_dtype)
    w3_p = pad2(w3, H2_p, C_p).astype(compute_dtype)
    b1_p = pad2(b1, 1, H1_p).astype(jnp.float32)
    b2_p = pad2(b2, 1, H2_p).astype(jnp.float32)
    b3_p = pad2(b3, 1, C_p).astype(jnp.float32)

    grid = (B_p // bm,)

    def resident(shape):
        # Same block index every grid step -> weight/bias stays VMEM-resident.
        return pl.BlockSpec(shape, lambda i: tuple(0 for _ in shape))

    flops = 2 * B_p * (F_p * H1_p + H1_p * H2_p + H2_p * C_p)
    bytes_accessed = (
        x_p.size * x_p.dtype.itemsize
        + sum(a.size * a.dtype.itemsize
              for a in (w1_p, b1_p, w2_p, b2_p, w3_p, b3_p))
        + B_p * C_p * 4)

    out = pl.pallas_call(
        mlp_kernel,
        out_shape=jax.ShapeDtypeStruct((B_p, C_p), jnp.float32),
        grid=grid,
        in_specs=[
            pl.BlockSpec((bm, F_p), lambda i: (i, 0)),   # streaming x tile
            resident((F_p, H1_p)),                       # W1 (VMEM resident)
            resident((1, H1_p)),                         # b1
            resident((H1_p, H2_p)),                      # W2
            resident((1, H2_p)),                         # b2
            resident((H2_p, C_p)),                       # W3
            resident((1, C_p)),                          # b3
        ],
        out_specs=pl.BlockSpec((bm, C_p), lambda i: (i, 0)),
        compiler_params=pltpu.CompilerParams(
            dimension_semantics=("parallel",)),
        cost_estimate=pl.CostEstimate(
            flops=flops, transcendentals=0, bytes_accessed=bytes_accessed),
    )(x_p, w1_p, b1_p, w2_p, b2_p, w3_p, b3_p)

    return out[:B, :C]


def init_linear(key, fan_in, fan_out):
    """Deterministic nn.Linear-style init: U(-1/sqrt(fan_in), 1/sqrt(fan_in))."""
    kw, kb = jax.random.split(key)
    bound = 1.0 / (fan_in ** 0.5)
    w = jax.random.uniform(kw, (fan_in, fan_out), jnp.float32, -bound, bound)
    b = jax.random.uniform(kb, (1, fan_out), jnp.float32, -bound, bound)
    return w, b


def reference_forward(x, params, compute_dtype=jnp.bfloat16):
    """Pure-JAX reference that mirrors the kernel's dtype handling."""
    w1, b1, w2, b2, w3, b3 = params
    cd = compute_dtype
    h1 = jnp.dot(x.astype(cd), w1.astype(cd),
                 preferred_element_type=jnp.float32) + b1
    h1 = jnp.maximum(h1, 0.0)
    h2 = jnp.dot(h1.astype(cd), w2.astype(cd),
                 preferred_element_type=jnp.float32) + b2
    h2 = jnp.maximum(h2, 0.0)
    return jnp.dot(h2.astype(cd), w3.astype(cd),
                   preferred_element_type=jnp.float32) + b3


def reference_forward_f32(x, params):
    w1, b1, w2, b2, w3, b3 = params
    h1 = jnp.maximum(x @ w1 + b1, 0.0)
    h2 = jnp.maximum(h1 @ w2 + b2, 0.0)
    return h2 @ w3 + b3


if __name__ == "__main__":
    # Small shapes consistent with the module:
    #   input_size=512 features, dense_hidden_units=[200, 200], n_classes=2
    input_size = 512
    hidden = [200, 200]
    n_classes = 2
    batch = 8

    key = jax.random.PRNGKey(0)
    kx, k1, k2, k3 = jax.random.split(key, 4)

    # Binary-ish malware feature vectors (the detector consumes 0/1 features).
    x = (jax.random.uniform(kx, (batch, input_size)) > 0.5).astype(jnp.float32)

    w1, b1 = init_linear(k1, input_size, hidden[0])
    w2, b2 = init_linear(k2, hidden[0], hidden[1])
    w3, b3 = init_linear(k3, hidden[1], n_classes)
    params = (w1, b1, w2, b2, w3, b3)

    fwd = jax.jit(functools.partial(md_dnn_forward))
    logits = fwd(x, params)
    logits = jax.block_until_ready(logits)
    assert logits.shape == (batch, n_classes)

    # Tight check against a reference with identical bf16/f32 dtype handling.
    ref_bf16 = reference_forward(x, params)
    assert jnp.allclose(logits, ref_bf16, atol=2e-3, rtol=2e-3), \
        "mismatch vs bf16-matched reference"

    # Loose sanity check against the pure-f32 math of the PyTorch module.
    ref_f32 = reference_forward_f32(x, params)
    assert jnp.allclose(logits, ref_f32, atol=5e-2, rtol=5e-2), \
        "mismatch vs f32 reference"

    print("KERNEL_OK")
</pallas_src>

<mosaic_0001>
module attributes {stable_mosaic.version = 11 : i64} {
  func.func @mlp_kernel(%arg0: i32, %arg1: memref<128x512xbf16, #tpu.memory_space<vmem>>, %arg2: memref<512x256xbf16, #tpu.memory_space<vmem>>, %arg3: memref<1x256xf32, #tpu.memory_space<vmem>>, %arg4: memref<256x256xbf16, #tpu.memory_space<vmem>>, %arg5: memref<1x256xf32, #tpu.memory_space<vmem>>, %arg6: memref<256x128xbf16, #tpu.memory_space<vmem>>, %arg7: memref<1x128xf32, #tpu.memory_space<vmem>>, %arg8: memref<128x128xf32, #tpu.memory_space<vmem>>) attributes {dimension_semantics = [#tpu.dimension_semantics<parallel>], iteration_bounds = array<i64: 1>, scalar_prefetch = 0 : i64, scratch_operands = 0 : i64, tpu.core_type = #tpu.core_type<tc>, window_params = [{transform_indices = @transform_0, window_bounds = array<i64: 128, 512>}, {pipeline_mode = #tpu.pipeline_mode<synchronous>, transform_indices = @transform_1, window_bounds = array<i64: 512, 256>}, {pipeline_mode = #tpu.pipeline_mode<synchronous>, transform_indices = @transform_2, window_bounds = array<i64: 1, 256>}, {pipeline_mode = #tpu.pipeline_mode<synchronous>, transform_indices = @transform_3, window_bounds = array<i64: 256, 256>}, {pipeline_mode = #tpu.pipeline_mode<synchronous>, transform_indices = @transform_4, window_bounds = array<i64: 1, 256>}, {pipeline_mode = #tpu.pipeline_mode<synchronous>, transform_indices = @transform_5, window_bounds = array<i64: 256, 128>}, {pipeline_mode = #tpu.pipeline_mode<synchronous>, transform_indices = @transform_6, window_bounds = array<i64: 1, 128>}, {transform_indices = @transform_7, window_bounds = array<i64: 128, 128>}]} {
    %c0 = arith.constant 0 : index
    %c0_0 = arith.constant 0 : index
    %0 = vector.load %arg1[%c0, %c0_0] : memref<128x512xbf16, #tpu.memory_space<vmem>>, vector<128x512xbf16>
    %c0_1 = arith.constant 0 : index
    %c0_2 = arith.constant 0 : index
    %1 = vector.load %arg2[%c0_1, %c0_2] : memref<512x256xbf16, #tpu.memory_space<vmem>>, vector<512x256xbf16>
    %cst = arith.constant dense<0.000000e+00> : vector<128x256xf32>
    %2 = tpu.matmul %0, %1, %cst {dimension_numbers = #tpu.dot_dimension_numbers<[1], [0], [0], [1], [0, 0, 1, 1], [], []>} : vector<128x512xbf16>, vector<512x256xbf16>, vector<128x256xf32> -> vector<128x256xf32>
    %c0_3 = arith.constant 0 : index
    %c0_4 = arith.constant 0 : index
    %3 = vector.load %arg3[%c0_3, %c0_4] : memref<1x256xf32, #tpu.memory_space<vmem>>, vector<1x256xf32>
    %4 = vector.broadcast %3 : vector<1x256xf32> to vector<128x256xf32>
    %5 = arith.addf %2, %4 : vector<128x256xf32>
    %cst_5 = arith.constant 0.000000e+00 : f32
    %6 = vector.broadcast %cst_5 : f32 to vector<128x256xf32>
    %7 = arith.maximumf %5, %6 : vector<128x256xf32>
    %8 = arith.truncf %7 : vector<128x256xf32> to vector<128x256xbf16>
    %c0_6 = arith.constant 0 : index
    %c0_7 = arith.constant 0 : index
    %9 = vector.load %arg4[%c0_6, %c0_7] : memref<256x256xbf16, #tpu.memory_space<vmem>>, vector<256x256xbf16>
    %cst_8 = arith.constant dense<0.000000e+00> : vector<128x256xf32>
    %10 = tpu.matmul %8, %9, %cst_8 {dimension_numbers = #tpu.dot_dimension_numbers<[1], [0], [0], [1], [0, 0, 1, 1], [], []>} : vector<128x256xbf16>, vector<256x256xbf16>, vector<128x256xf32> -> vector<128x256xf32>
    %c0_9 = arith.constant 0 : index
    %c0_10 = arith.constant 0 : index
    %11 = vector.load %arg5[%c0_9, %c0_10] : memref<1x256xf32, #tpu.memory_space<vmem>>, vector<1x256xf32>
    %12 = vector.broadcast %11 : vector<1x256xf32> to vector<128x256xf32>
    %13 = arith.addf %10, %12 : vector<128x256xf32>
    %cst_11 = arith.constant 0.000000e+00 : f32
    %14 = vector.broadcast %cst_11 : f32 to vector<128x256xf32>
    %15 = arith.maximumf %13, %14 : vector<128x256xf32>
    %16 = arith.truncf %15 : vector<128x256xf32> to vector<128x256xbf16>
    %c0_12 = arith.constant 0 : index
    %c0_13 = arith.constant 0 : index
    %17 = vector.load %arg6[%c0_12, %c0_13] : memref<256x128xbf16, #tpu.memory_space<vmem>>, vector<256x128xbf16>
    %cst_14 = arith.constant dense<0.000000e+00> : vector<128x128xf32>
    %18 = tpu.matmul %16, %17, %cst_14 {dimension_numbers = #tpu.dot_dimension_numbers<[1], [0], [0], [1], [0, 0, 1, 1], [], []>} : vector<128x256xbf16>, vector<256x128xbf16>, vector<128x128xf32> -> vector<128x128xf32>
    %c0_15 = arith.constant 0 : index
    %c0_16 = arith.constant 0 : index
    %19 = vector.load %arg7[%c0_15, %c0_16] : memref<1x128xf32, #tpu.memory_space<vmem>>, vector<1x128xf32>
    %20 = vector.broadcast %19 : vector<1x128xf32> to vector<128x128xf32>
    %21 = arith.addf %18, %20 : vector<128x128xf32>
    %c0_17 = arith.constant 0 : index
    %c0_18 = arith.constant 0 : index
    %22 = vector.load %arg8[%c0_17, %c0_18] : memref<128x128xf32, #tpu.memory_space<vmem>>, vector<128x128xf32>
    tpu.vector_store %arg8[%c0_17, %c0_18], %21 {strides = array<i32>} : memref<128x128xf32, #tpu.memory_space<vmem>>, vector<128x128xf32>,
    return
  }
  func.func @transform_0(%arg0: i32) -> (i32, i32) {
    %c0_i32 = arith.constant 0 : i32
    %c0_i32_0 = arith.constant 0 : i32
    return %arg0, %c0_i32 : i32, i32
  }
  func.func @transform_1(%arg0: i32) -> (i32, i32) {
    %c0_i32 = arith.constant 0 : i32
    %c0_i32_0 = arith.constant 0 : i32
    %c0_i32_1 = arith.constant 0 : i32
    return %c0_i32, %c0_i32_0 : i32, i32
  }
  func.func @transform_2(%arg0: i32) -> (i32, i32) {
    %c0_i32 = arith.constant 0 : i32
    %c0_i32_0 = arith.constant 0 : i32
    %c0_i32_1 = arith.constant 0 : i32
    return %c0_i32, %c0_i32_0 : i32, i32
  }
  func.func @transform_3(%arg0: i32) -> (i32, i32) {
    %c0_i32 = arith.constant 0 : i32
    %c0_i32_0 = arith.constant 0 : i32
    %c0_i32_1 = arith.constant 0 : i32
    return %c0_i32, %c0_i32_0 : i32, i32
  }
  func.func @transform_4(%arg0: i32) -> (i32, i32) {
    %c0_i32 = arith.constant 0 : i32
    %c0_i32_0 = arith.constant 0 : i32
    %c0_i32_1 = arith.constant 0 : i32
    return %c0_i32, %c0_i32_0 : i32, i32
  }
  func.func @transform_5(%arg0: i32) -> (i32, i32) {
    %c0_i32 = arith.constant 0 : i32
    %c0_i32_0 = arith.constant 0 : i32
    %c0_i32_1 = arith.constant 0 : i32
    return %c0_i32, %c0_i32_0 : i32, i32
  }
  func.func @transform_6(%arg0: i32) -> (i32, i32) {
    %c0_i32 = arith.constant 0 : i32
    %c0_i32_0 = arith.constant 0 : i32
    %c0_i32_1 = arith.constant 0 : i32
    return %c0_i32, %c0_i32_0 : i32, i32
  }
  func.func @transform_7(%arg0: i32) -> (i32, i32) {
    %c0_i32 = arith.constant 0 : i32
    %c0_i32_0 = arith.constant 0 : i32
    return %arg0, %c0_i32 : i32, i32
  }
}

</mosaic_0001>

<llo_original>
// kernel: md_dnn_forward.1
$region0: #{md_dnn_forward.1}
  #allocation0 [shape = 'u32[]', space=smem, size = 0x4, offset = 0x4, fixed_abs, tag = 'smem constant byte address 0x4 - core index']
  #allocation1 [shape = 'u32[144,128]{1,0:T(1,128)}', space=vmem, size = 0x12000, scoped, tag = 'internal scratch']
  %s0 = inlined_call_operand.vmem [shape: bf16[128,512], index: 0, kind: input, shape index: {}]
  %s1 = inlined_call_operand.vmem [shape: bf16[512,256], index: 1, kind: input, shape index: {}]
  %s2 = inlined_call_operand.vmem [shape: f32[1,256], index: 2, kind: input, shape index: {}]
  %s3 = inlined_call_operand.vmem [shape: bf16[256,256], index: 3, kind: input, shape index: {}]
  %s4 = inlined_call_operand.vmem [shape: f32[1,256], index: 4, kind: input, shape index: {}]
  %s5 = inlined_call_operand.vmem [shape: bf16[256,128], index: 5, kind: input, shape index: {}]
  %s6 = inlined_call_operand.vmem [shape: f32[1,128], index: 6, kind: input, shape index: {}]
  %s7 = inlined_call_operand.vmem [shape: f32[128,128], index: 7, kind: output, shape index: {}]
  %s8 = sld [smem:[#allocation0]]
  $region38: #{md_dnn_forward.1} parent=0
    _
  %s10 = ssub.s32 1, %s8
  %s11 = scalar_select 0, %s10, %s8
  // Predicated region
  $region2: #{md_dnn_forward.1} parent=0 // pred_check
    _
  $region3: #{md_dnn_forward.1} parent=0 // pred_check_branch
    %13 = sbr.rel (0) target = $region5
  $region4: #{md_dnn_forward.1} parent=0 // pred_region
    _
  $region5: #{md_dnn_forward.1} parent=0 // pred_fallthru
    _
  // Predicated region
  $region6: #{md_dnn_forward.1} parent=0 // pred_check
    _
  $region7: #{md_dnn_forward.1} parent=0 // pred_check_branch
    %15 = sbr.rel (0) target = $region9
  $region8: #{md_dnn_forward.1} parent=0 // pred_region
    _
  $region9: #{md_dnn_forward.1} parent=0 // pred_fallthru
    _
  // Predicated region
  $region10: #{md_dnn_forward.1} parent=0 // pred_check
    _
  $region11: #{md_dnn_forward.1} parent=0 // pred_check_branch
    %17 = sbr.rel (0) target = $region13
  $region12: #{md_dnn_forward.1} parent=0 // pred_region
    _
  $region13: #{md_dnn_forward.1} parent=0 // pred_fallthru
    _
  // Predicated region
  $region14: #{md_dnn_forward.1} parent=0 // pred_check
    _
  $region15: #{md_dnn_forward.1} parent=0 // pred_check_branch
    %19 = sbr.rel (0) target = $region17
  $region16: #{md_dnn_forward.1} parent=0 // pred_region
    _
  $region17: #{md_dnn_forward.1} parent=0 // pred_fallthru
    _
  // Predicated region
  $region18: #{md_dnn_forward.1} parent=0 // pred_check
    _
  $region19: #{md_dnn_forward.1} parent=0 // pred_check_branch
    %21 = sbr.rel (0) target = $region21
  $region20: #{md_dnn_forward.1} parent=0 // pred_region
    _
  $region21: #{md_dnn_forward.1} parent=0 // pred_fallthru
    _
  // Predicated region
  $region22: #{md_dnn_forward.1} parent=0 // pred_check
    _
  $region23: #{md_dnn_forward.1} parent=0 // pred_check_branch
    %23 = sbr.rel (0) target = $region25
  $region24: #{md_dnn_forward.1} parent=0 // pred_region
    _
  $region25: #{md_dnn_forward.1} parent=0 // pred_fallthru
    _
  // Predicated region
  $region26: #{md_dnn_forward.1} parent=0 // pred_check
    _
  $region27: #{md_dnn_forward.1} parent=0 // pred_check_branch
    %25 = sbr.rel (0) target = $region29
  $region28: #{md_dnn_forward.1} parent=0 // pred_region
    _
  $region29: #{md_dnn_forward.1} parent=0 // pred_fallthru
    _
  %v27 = vld [vmem:[%s0] sm:$0xff]
  %v28 = vld [vmem:[%s0 + $0x8] sm:$0xff]
  %v29 = vld [vmem:[%s0 + $0x10] sm:$0xff]
  %v30 = vld [vmem:[%s0 + $0x18] sm:$0xff]
  %v31 = vld [vmem:[%s0 + $0x20] sm:$0xff]
  %v32 = vld [vmem:[%s0 + $0x28] sm:$0xff]
  %v33 = vld [vmem:[%s0 + $0x30] sm:$0xff]
  %v34 = vld [vmem:[%s0 + $0x38] sm:$0xff]
  %v35 = vld [vmem:[%s0 + $0x40] sm:$0xff]
  %v36 = vld [vmem:[%s0 + $0x48] sm:$0xff]
  %v37 = vld [vmem:[%s0 + $0x50] sm:$0xff]
  %v38 = vld [vmem:[%s0 + $0x58] sm:$0xff]
  %v39 = vld [vmem:[%s0 + $0x60] sm:$0xff]
  %v40 = vld [vmem:[%s0 + $0x68] sm:$0xff]
  %v41 = vld [vmem:[%s0 + $0x70] sm:$0xff]
  %v42 = vld [vmem:[%s0 + $0x78] sm:$0xff]
  %v43 = vld [vmem:[%s0 + $0x80] sm:$0xff]
  %v44 = vld [vmem:[%s0 + $0x88] sm:$0xff]
  %v45 = vld [vmem:[%s0 + $0x90] sm:$0xff]
  %v46 = vld [vmem:[%s0 + $0x98] sm:$0xff]
  %v47 = vld [vmem:[%s0 + $0xa0] sm:$0xff]
  %v48 = vld [vmem:[%s0 + $0xa8] sm:$0xff]
  %v49 = vld [vmem:[%s0 + $0xb0] sm:$0xff]
  %v50 = vld [vmem:[%s0 + $0xb8] sm:$0xff]
  %v51 = vld [vmem:[%s0 + $0xc0] sm:$0xff]
  %v52 = vld [vmem:[%s0 + $0xc8] sm:$0xff]
  %v53 = vld [vmem:[%s0 + $0xd0] sm:$0xff]
  %v54 = vld [vmem:[%s0 + $0xd8] sm:$0xff]
  %v55 = vld [vmem:[%s0 + $0xe0] sm:$0xff]
  %v56 = vld [vmem:[%s0 + $0xe8] sm:$0xff]
  %v57 = vld [vmem:[%s0 + $0xf0] sm:$0xff]
  %v58 = vld [vmem:[%s0 + $0xf8] sm:$0xff]
  %v59 = vld [vmem:[%s1] sm:$0xff]
  %v60 = vld [vmem:[%s1 + $0x8] sm:$0xff]
  %v61 = vld [vmem:[%s1 + $0x10] sm:$0xff]
  %v62 = vld [vmem:[%s1 + $0x18] sm:$0xff]
  %v63 = vld [vmem:[%s1 + $0x20] sm:$0xff]
  %v64 = vld [vmem:[%s1 + $0x28] sm:$0xff]
  %v65 = vld [vmem:[%s1 + $0x30] sm:$0xff]
  %v66 = vld [vmem:[%s1 + $0x38] sm:$0xff]
  %v67 = vld [vmem:[%s1 + $0x40] sm:$0xff]
  %v68 = vld [vmem:[%s1 + $0x48] sm:$0xff]
  %v69 = vld [vmem:[%s1 + $0x50] sm:$0xff]
  %v70 = vld [vmem:[%s1 + $0x58] sm:$0xff]
  %v71 = vld [vmem:[%s1 + $0x60] sm:$0xff]
  %v72 = vld [vmem:[%s1 + $0x68] sm:$0xff]
  %v73 = vld [vmem:[%s1 + $0x70] sm:$0xff]
  %v74 = vld [vmem:[%s1 + $0x78] sm:$0xff]
  %v75 = vld [vmem:[%s1 + $0x80] sm:$0xff]
  %v76 = vld [vmem:[%s1 + $0x88] sm:$0xff]
  %v77 = vld [vmem:[%s1 + $0x90] sm:$0xff]
  %v78 = vld [vmem:[%s1 + $0x98] sm:$0xff]
  %v79 = vld [vmem:[%s1 + $0xa0] sm:$0xff]
  %v80 = vld [vmem:[%s1 + $0xa8] sm:$0xff]
  %v81 = vld [vmem:[%s1 + $0xb0] sm:$0xff]
  %v82 = vld [vmem:[%s1 + $0xb8] sm:$0xff]
  %v83 = vld [vmem:[%s1 + $0xc0] sm:$0xff]
  %v84 = vld [vmem:[%s1 + $0xc8] sm:$0xff]
  %v85 = vld [vmem:[%s1 + $0xd0] sm:$0xff]
  %v86 = vld [vmem:[%s1 + $0xd8] sm:$0xff]
  %v87 = vld [vmem:[%s1 + $0xe0] sm:$0xff]
  %v88 = vld [vmem:[%s1 + $0xe8] sm:$0xff]
  %v89 = vld [vmem:[%s1 + $0xf0] sm:$0xff]
  %v90 = vld [vmem:[%s1 + $0xf8] sm:$0xff]
  %v91 = vld [vmem:[%s1 + $0x100] sm:$0xff]
  %v92 = vld [vmem:[%s1 + $0x108] sm:$0xff]
  %v93 = vld [vmem:[%s1 + $0x110] sm:$0xff]
  %v94 = vld [vmem:[%s1 + $0x118] sm:$0xff]
  %v95 = vld [vmem:[%s1 + $0x120] sm:$0xff]
  %v96 = vld [vmem:[%s1 + $0x128] sm:$0xff]
  %v97 = vld [vmem:[%s1 + $0x130] sm:$0xff]
  %v98 = vld [vmem:[%s1 + $0x138] sm:$0xff]
  %v99 = vld [vmem:[%s1 + $0x140] sm:$0xff]
  %v100 = vld [vmem:[%s1 + $0x148] sm:$0xff]
  %v101 = vld [vmem:[%s1 + $0x150] sm:$0xff]
  %v102 = vld [vmem:[%s1 + $0x158] sm:$0xff]
  %v103 = vld [vmem:[%s1 + $0x160] sm:$0xff]
  %v104 = vld [vmem:[%s1 + $0x168] sm:$0xff]
  %v105 = vld [vmem:[%s1 + $0x170] sm:$0xff]
  %v106 = vld [vmem:[%s1 + $0x178] sm:$0xff]
  %v107 = vld [vmem:[%s1 + $0x180] sm:$0xff]
  %v108 = vld [vmem:[%s1 + $0x188] sm:$0xff]
  %v109 = vld [vmem:[%s1 + $0x190] sm:$0xff]
  %v110 = vld [vmem:[%s1 + $0x198] sm:$0xff]
  %v111 = vld [vmem:[%s1 + $0x1a0] sm:$0xff]
  %v112 = vld [vmem:[%s1 + $0x1a8] sm:$0xff]
  %v113 = vld [vmem:[%s1 + $0x1b0] sm:$0xff]
  %v114 = vld [vmem:[%s1 + $0x1b8] sm:$0xff]
  %v115 = vld [vmem:[%s1 + $0x1c0] sm:$0xff]
  %v116 = vld [vmem:[%s1 + $0x1c8] sm:$0xff]
  %v117 = vld [vmem:[%s1 + $0x1d0] sm:$0xff]
  %v118 = vld [vmem:[%s1 + $0x1d8] sm:$0xff]
  %v119 = vld [vmem:[%s1 + $0x1e0] sm:$0xff]
  %v120 = vld [vmem:[%s1 + $0x1e8] sm:$0xff]
  %v121 = vld [vmem:[%s1 + $0x1f0] sm:$0xff]
  %v122 = vld [vmem:[%s1 + $0x1f8] sm:$0xff]
  %v123 = vld [vmem:[%s2] sm:$0x3]
  %v125 = vlaneseq
  %v126 = vshrl.u32 %v125, 7
  %v127 = vsub.s32 0, %v126
  %v128 = vrot.slane %v123, %v127
  %v129 = vlaneseq
  %v130 = vshrl.u32 %v129, 7
  %v131 = vsub.s32 1, %v130
  %v132 = vrot.slane %v123, %v131
  %v167 = vunpack.c.l.b16 %v27
  %v168 = vunpack.c.h.b16 %v27
  %v169 = vunpack.c.l.b16 %v28
  %v170 = vunpack.c.h.b16 %v28
  %v171 = vunpack.c.l.b16 %v29
  %v172 = vunpack.c.h.b16 %v29
  %v173 = vunpack.c.l.b16 %v30
  %v174 = vunpack.c.h.b16 %v30
  %v175 = vunpack.c.l.b16 %v31
  %v176 = vunpack.c.h.b16 %v31
  %v177 = vunpack.c.l.b16 %v32
  %v178 = vunpack.c.h.b16 %v32
  %v179 = vunpack.c.l.b16 %v33
  %v180 = vunpack.c.h.b16 %v33
  %v181 = vunpack.c.l.b16 %v34
  %v182 = vunpack.c.h.b16 %v34
  %v183 = vunpack.c.l.b16 %v35
  %v184 = vunpack.c.h.b16 %v35
  %v185 = vunpack.c.l.b16 %v36
  %v186 = vunpack.c.h.b16 %v36
  %v187 = vunpack.c.l.b16 %v37
  %v188 = vunpack.c.h.b16 %v37
  %v189 = vunpack.c.l.b16 %v38
  %v190 = vunpack.c.h.b16 %v38
  %v191 = vunpack.c.l.b16 %v39
  %v192 = vunpack.c.h.b16 %v39
  %v193 = vunpack.c.l.b16 %v40
  %v194 = vunpack.c.h.b16 %v40
  %v195 = vunpack.c.l.b16 %v41
  %v196 = vunpack.c.h.b16 %v41
  %v197 = vunpack.c.l.b16 %v42
  %v198 = vunpack.c.h.b16 %v42
  %v199 = vunpack.c.l.b16 %v43
  %v200 = vunpack.c.h.b16 %v43
  %v201 = vunpack.c.l.b16 %v44
  %v202 = vunpack.c.h.b16 %v44
  %v203 = vunpack.c.l.b16 %v45
  %v204 = vunpack.c.h.b16 %v45
  %v205 = vunpack.c.l.b16 %v46
  %v206 = vunpack.c.h.b16 %v46
  %v207 = vunpack.c.l.b16 %v47
  %v208 = vunpack.c.h.b16 %v47
  %v209 = vunpack.c.l.b16 %v48
  %v210 = vunpack.c.h.b16 %v48
  %v211 = vunpack.c.l.b16 %v49
  %v212 = vunpack.c.h.b16 %v49
  %v213 = vunpack.c.l.b16 %v50
  %v214 = vunpack.c.h.b16 %v50
  %v215 = vunpack.c.l.b16 %v51
  %v216 = vunpack.c.h.b16 %v51
  %v217 = vunpack.c.l.b16 %v52
  %v218 = vunpack.c.h.b16 %v52
  %v219 = vunpack.c.l.b16 %v53
  %v220 = vunpack.c.h.b16 %v53
  %v221 = vunpack.c.l.b16 %v54
  %v222 = vunpack.c.h.b16 %v54
  %v223 = vunpack.c.l.b16 %v55
  %v224 = vunpack.c.h.b16 %v55
  %v225 = vunpack.c.l.b16 %v56
  %v226 = vunpack.c.h.b16 %v56
  %v227 = vunpack.c.l.b16 %v57
  %v228 = vunpack.c.h.b16 %v57
  %v229 = vunpack.c.l.b16 %v58
  %v230 = vunpack.c.h.b16 %v58
  %v231 = vpack.c.b16 %v171, %v167
  %v232 = vpack.c.b16 %v172, %v168
  %v233 = vpack.c.b16 %v173, %v169
  %v234 = vpack.c.b16 %v174, %v170
  %v235 = vpack.c.b16 %v179, %v175
  %v236 = vpack.c.b16 %v180, %v176
  %v237 = vpack.c.b16 %v181, %v177
  %v238 = vpack.c.b16 %v182, %v178
  %v239 = vpack.c.b16 %v187, %v183
  %v240 = vpack.c.b16 %v188, %v184
  %v241 = vpack.c.b16 %v189, %v185
  %v242 = vpack.c.b16 %v190, %v186
  %v243 = vpack.c.b16 %v195, %v191
  %v244 = vpack.c.b16 %v196, %v192
  %v245 = vpack.c.b16 %v197, %v193
  %v246 = vpack.c.b16 %v198, %v194
  %v247 = vpack.c.b16 %v203, %v199
  %v248 = vpack.c.b16 %v204, %v200
  %v249 = vpack.c.b16 %v205, %v201
  %v250 = vpack.c.b16 %v206, %v202
  %v251 = vpack.c.b16 %v211, %v207
  %v252 = vpack.c.b16 %v212, %v208
  %v253 = vpack.c.b16 %v213, %v209
  %v254 = vpack.c.b16 %v214, %v210
  %v255 = vpack.c.b16 %v219, %v215
  %v256 = vpack.c.b16 %v220, %v216
  %v257 = vpack.c.b16 %v221, %v217
  %v258 = vpack.c.b16 %v222, %v218
  %v259 = vpack.c.b16 %v227, %v223
  %v260 = vpack.c.b16 %v228, %v224
  %v261 = vpack.c.b16 %v229, %v225
  %v262 = vpack.c.b16 %v230, %v226
  %v359 = vunpack.c.l.b16 %v59
  %v360 = vunpack.c.h.b16 %v59
  %v361 = vunpack.c.l.b16 %v60
  %v362 = vunpack.c.h.b16 %v60
  %v363 = vunpack.c.l.b16 %v61
  %v364 = vunpack.c.h.b16 %v61
  %v365 = vunpack.c.l.b16 %v62
  %v366 = vunpack.c.h.b16 %v62
  %v367 = vunpack.c.l.b16 %v63
  %v368 = vunpack.c.h.b16 %v63
  %v369 = vunpack.c.l.b16 %v64
  %v370 = vunpack.c.h.b16 %v64
  %v371 = vunpack.c.l.b16 %v65
  %v372 = vunpack.c.h.b16 %v65
  %v373 = vunpack.c.l.b16 %v66
  %v374 = vunpack.c.h.b16 %v66
  %v375 = vunpack.c.l.b16 %v67
  %v376 = vunpack.c.h.b16 %v67
  %v377 = vunpack.c.l.b16 %v68
  %v378 = vunpack.c.h.b16 %v68
  %v379 = vunpack.c.l.b16 %v69
  %v380 = vunpack.c.h.b16 %v69
  %v381 = vunpack.c.l.b16 %v70
  %v382 = vunpack.c.h.b16 %v70
  %v383 = vunpack.c.l.b16 %v71
  %v384 = vunpack.c.h.b16 %v71
  %v385 = vunpack.c.l.b16 %v72
  %v386 = vunpack.c.h.b16 %v72
  %v387 = vunpack.c.l.b16 %v73
  %v388 = vunpack.c.h.b16 %v73
  %v389 = vunpack.c.l.b16 %v74
  %v390 = vunpack.c.h.b16 %v74
  %v391 = vunpack.c.l.b16 %v75
  %v392 = vunpack.c.h.b16 %v75
  %v393 = vunpack.c.l.b16 %v76
  %v394 = vunpack.c.h.b16 %v76
  %v395 = vunpack.c.l.b16 %v77
  %v396 = vunpack.c.h.b16 %v77
  %v397 = vunpack.c.l.b16 %v78
  %v398 = vunpack.c.h.b16 %v78
  %v399 = vunpack.c.l.b16 %v79
  %v400 = vunpack.c.h.b16 %v79
  %v401 = vunpack.c.l.b16 %v80
  %v402 = vunpack.c.h.b16 %v80
  %v403 = vunpack.c.l.b16 %v81
  %v404 = vunpack.c.h.b16 %v81
  %v405 = vunpack.c.l.b16 %v82
  %v406 = vunpack.c.h.b16 %v82
  %v407 = vunpack.c.l.b16 %v83
  %v408 = vunpack.c.h.b16 %v83
  %v409 = vunpack.c.l.b16 %v84
  %v410 = vunpack.c.h.b16 %v84
  %v411 = vunpack.c.l.b16 %v85
  %v412 = vunpack.c.h.b16 %v85
  %v413 = vunpack.c.l.b16 %v86
  %v414 = vunpack.c.h.b16 %v86
  %v415 = vunpack.c.l.b16 %v87
  %v416 = vunpack.c.h.b16 %v87
  %v417 = vunpack.c.l.b16 %v88
  %v418 = vunpack.c.h.b16 %v88
  %v419 = vunpack.c.l.b16 %v89
  %v420 = vunpack.c.h.b16 %v89
  %v421 = vunpack.c.l.b16 %v90
  %v422 = vunpack.c.h.b16 %v90
  %v423 = vunpack.c.l.b16 %v91
  %v424 = vunpack.c.h.b16 %v91
  %v425 = vunpack.c.l.b16 %v92
  %v426 = vunpack.c.h.b16 %v92
  %v427 = vunpack.c.l.b16 %v93
  %v428 = vunpack.c.h.b16 %v93
  %v429 = vunpack.c.l.b16 %v94
  %v430 = vunpack.c.h.b16 %v94
  %v431 = vunpack.c.l.b16 %v95
  %v432 = vunpack.c.h.b16 %v95
  %v433 = vunpack.c.l.b16 %v96
  %v434 = vunpack.c.h.b16 %v96
  %v435 = vunpack.c.l.b16 %v97
  %v436 = vunpack.c.h.b16 %v97
  %v437 = vunpack.c.l.b16 %v98
  %v438 = vunpack.c.h.b16 %v98
  %v439 = vunpack.c.l.b16 %v99
  %v440 = vunpack.c.h.b16 %v99
  %v441 = vunpack.c.l.b16 %v100
  %v442 = vunpack.c.h.b16 %v100
  %v443 = vunpack.c.l.b16 %v101
  %v444 = vunpack.c.h.b16 %v101
  %v445 = vunpack.c.l.b16 %v102
  %v446 = vunpack.c.h.b16 %v102
  %v447 = vunpack.c.l.b16 %v103
  %v448 = vunpack.c.h.b16 %v103
  %v449 = vunpack.c.l.b16 %v104
  %v450 = vunpack.c.h.b16 %v104
  %v451 = vunpack.c.l.b16 %v105
  %v452 = vunpack.c.h.b16 %v105
  %v453 = vunpack.c.l.b16 %v106
  %v454 = vunpack.c.h.b16 %v106
  %v455 = vunpack.c.l.b16 %v107
  %v456 = vunpack.c.h.b16 %v107
  %v457 = vunpack.c.l.b16 %v108
  %v458 = vunpack.c.h.b16 %v108
  %v459 = vunpack.c.l.b16 %v109
  %v460 = vunpack.c.h.b16 %v109
  %v461 = vunpack.c.l.b16 %v110
  %v462 = vunpack.c.h.b16 %v110
  %v463 = vunpack.c.l.b16 %v111
  %v464 = vunpack.c.h.b16 %v111
  %v465 = vunpack.c.l.b16 %v112
  %v466 = vunpack.c.h.b16 %v112
  %v467 = vunpack.c.l.b16 %v113
  %v468 = vunpack.c.h.b16 %v113
  %v469 = vunpack.c.l.b16 %v114
  %v470 = vunpack.c.h.b16 %v114
  %v471 = vunpack.c.l.b16 %v115
  %v472 = vunpack.c.h.b16 %v115
  %v473 = vunpack.c.l.b16 %v116
  %v474 = vunpack.c.h.b16 %v116
  %v475 = vunpack.c.l.b16 %v117
  %v476 = vunpack.c.h.b16 %v117
  %v477 = vunpack.c.l.b16 %v118
  %v478 = vunpack.c.h.b16 %v118
  %v479 = vunpack.c.l.b16 %v119
  %v480 = vunpack.c.h.b16 %v119
  %v481 = vunpack.c.l.b16 %v120
  %v482 = vunpack.c.h.b16 %v120
  %v483 = vunpack.c.l.b16 %v121
  %v484 = vunpack.c.h.b16 %v121
  %v485 = vunpack.c.l.b16 %v122
  %v486 = vunpack.c.h.b16 %v122
  %v487 = vpack.c.b16 %v361, %v359
  %v488 = vpack.c.b16 %v362, %v360
  %v489 = vpack.c.b16 %v365, %v363
  %v490 = vpack.c.b16 %v366, %v364
  %v491 = vpack.c.b16 %v369, %v367
  %v492 = vpack.c.b16 %v370, %v368
  %v493 = vpack.c.b16 %v373, %v371
  %v494 = vpack.c.b16 %v374, %v372
  %v495 = vpack.c.b16 %v377, %v375
  %v496 = vpack.c.b16 %v378, %v376
  %v497 = vpack.c.b16 %v381, %v379
  %v498 = vpack.c.b16 %v382, %v380
  %v499 = vpack.c.b16 %v385, %v383
  %v500 = vpack.c.b16 %v386, %v384
  %v501 = vpack.c.b16 %v389, %v387
  %v502 = vpack.c.b16 %v390, %v388
  %v503 = vpack.c.b16 %v393, %v391
  %v504 = vpack.c.b16 %v394, %v392
  %v505 = vpack.c.b16 %v397, %v395
  %v506 = vpack.c.b16 %v398, %v396
  %v507 = vpack.c.b16 %v401, %v399
  %v508 = vpack.c.b16 %v402, %v400
  %v509 = vpack.c.b16 %v405, %v403
  %v510 = vpack.c.b16 %v406, %v404
  %v511 = vpack.c.b16 %v409, %v407
  %v512 = vpack.c.b16 %v410, %v408
  %v513 = vpack.c.b16 %v413, %v411
  %v514 = vpack.c.b16 %v414, %v412
  %v515 = vpack.c.b16 %v417, %v415
  %v516 = vpack.c.b16 %v418, %v416
  %v517 = vpack.c.b16 %v421, %v419
  %v518 = vpack.c.b16 %v422, %v420
  %v519 = vpack.c.b16 %v425, %v423
  %v520 = vpack.c.b16 %v426, %v424
  %v521 = vpack.c.b16 %v429, %v427
  %v522 = vpack.c.b16 %v430, %v428
  %v523 = vpack.c.b16 %v433, %v431
  %v524 = vpack.c.b16 %v434, %v432
  %v525 = vpack.c.b16 %v437, %v435
  %v526 = vpack.c.b16 %v438, %v436
  %v527 = vpack.c.b16 %v441, %v439
  %v528 = vpack.c.b16 %v442, %v440
  %v529 = vpack.c.b16 %v445, %v443
  %v530 = vpack.c.b16 %v446, %v444
  %v531 = vpack.c.b16 %v449, %v447
  %v532 = vpack.c.b16 %v450, %v448
  %v533 = vpack.c.b16 %v453, %v451
  %v534 = vpack.c.b16 %v454, %v452
  %v535 = vpack.c.b16 %v457, %v455
  %v536 = vpack.c.b16 %v458, %v456
  %v537 = vpack.c.b16 %v461, %v459
  %v538 = vpack.c.b16 %v462, %v460
  %v539 = vpack.c.b16 %v465, %v463
  %v540 = vpack.c.b16 %v466, %v464
  %v541 = vpack.c.b16 %v469, %v467
  %v542 = vpack.c.b16 %v470, %v468
  %v543 = vpack.c.b16 %v473, %v471
  %v544 = vpack.c.b16 %v474, %v472
  %v545 = vpack.c.b16 %v477, %v475
  %v546 = vpack.c.b16 %v478, %v476
  %v547 = vpack.c.b16 %v481, %v479
  %v548 = vpack.c.b16 %v482, %v480
  %v549 = vpack.c.b16 %v485, %v483
  %v550 = vpack.c.b16 %v486, %v484
  %615 = vmatprep.subr.bf16.mxu0 %v488
  %616 = vmatpush1.bf16.msra.mxu0 %v487
  %617 = vmatprep.subr.bf16.mxu0 %v490
  %618 = vmatpush1.bf16.msra.mxu0 %v489
  %619 = vmatprep.subr.bf16.mxu0 %v492
  %620 = vmatpush1.bf16.msra.mxu0 %v491
  %621 = vmatprep.subr.bf16.mxu0 %v494
  %622 = vmatpush1.bf16.msra.mxu0 %v493
  %623 = vmatprep.subr.bf16.mxu0 %v496
  %624 = vmatpush1.bf16.msra.mxu0 %v495
  %625 = vmatprep.subr.bf16.mxu0 %v498
  %626 = vmatpush1.bf16.msra.mxu0 %v497
  %627 = vmatprep.subr.bf16.mxu0 %v500
  %628 = vmatpush1.bf16.msra.mxu0 %v499
  %629 = vmatprep.subr.bf16.mxu0 %v502
  %630 = vmatpush1.bf16.msra.mxu0 %v501
  %631 = vmatprep.subr.bf16.mxu0 %v504
  %632 = vmatpush1.bf16.msra.mxu0 %v503
  %633 = vmatprep.subr.bf16.mxu0 %v506
  %634 = vmatpush1.bf16.msra.mxu0 %v505
  %635 = vmatprep.subr.bf16.mxu0 %v508
  %636 = vmatpush1.bf16.msra.mxu0 %v507
  %637 = vmatprep.subr.bf16.mxu0 %v510
  %638 = vmatpush1.bf16.msra.mxu0 %v509
  %639 = vmatprep.subr.bf16.mxu0 %v512
  %640 = vmatpush1.bf16.msra.mxu0 %v511
  %641 = vmatprep.subr.bf16.mxu0 %v514
  %642 = vmatpush1.bf16.msra.mxu0 %v513
  %643 = vmatprep.subr.bf16.mxu0 %v516
  %644 = vmatpush1.bf16.msra.mxu0 %v515
  %645 = vmatprep.subr.bf16.mxu0 %v518
  %646 = vmatpush1.bf16.msra.mxu0 %v517
  %647 = vmatprep.mubr.bf16.mxu0 %v232
  %648 = vmatmul.mubr.bf16.gmra.mrb[0].mxu0 %v231
  %v649 = vpop.f32.mrb[0].mxu0
  %v650 = vadd.f32 %v128, %v649
  %v651 = vpop.f32.mrb[0].mxu0
  %v652 = vadd.f32 %v132, %v651
  %v653 = vpop.f32.mrb[0].mxu0
  %v654 = vadd.f32 %v128, %v653
  %v655 = vpop.f32.mrb[0].mxu0
  %v656 = vadd.f32 %v132, %v655
  %657 = vmatprep.mubr.bf16.mxu0 %v236
  %658 = vmatmul.mubr.bf16.gmra.mrb[0].mxu0 %v235
  %v659 = vpop.f32.mrb[0].mxu0
  %v660 = vadd.f32 %v128, %v659
  %v661 = vpop.f32.mrb[0].mxu0
  %v662 = vadd.f32 %v132, %v661
  %v663 = vpop.f32.mrb[0].mxu0
  %v664 = vadd.f32 %v128, %v663
  %v665 = vpop.f32.mrb[0].mxu0
  %v666 = vadd.f32 %v132, %v665
  %667 = vmatprep.mubr.bf16.mxu0 %v240
  %668 = vmatmul.mubr.bf16.gmra.mrb[0].mxu0 %v239
  %v669 = vpop.f32.mrb[0].mxu0
  %v670 = vadd.f32 %v128, %v669
  %v671 = vpop.f32.mrb[0].mxu0
  %v672 = vadd.f32 %v132, %v671
  %v673 = vpop.f32.mrb[0].mxu0
  %v674 = vadd.f32 %v128, %v673
  %v675 = vpop.f32.mrb[0].mxu0
  %v676 = vadd.f32 %v132, %v675
  %677 = vmatprep.mubr.bf16.mxu0 %v244
  %678 = vmatmul.mubr.bf16.gmra.mrb[0].mxu0 %v243
  %v679 = vpop.f32.mrb[0].mxu0
  %v680 = vadd.f32 %v128, %v679
  %v681 = vpop.f32.mrb[0].mxu0
  %v682 = vadd.f32 %v132, %v681
  %v683 = vpop.f32.mrb[0].mxu0
  %v684 = vadd.f32 %v128, %v683
  %v685 = vpop.f32.mrb[0].mxu0
  %v686 = vadd.f32 %v132, %v685
  %687 = vmatprep.mubr.bf16.mxu0 %v248
  %688 = vmatmul.mubr.bf16.gmra.mrb[0].mxu0 %v247
  %v689 = vpop.f32.mrb[0].mxu0
  %v690 = vadd.f32 %v128, %v689
  %v691 = vpop.f32.mrb[0].mxu0
  %v692 = vadd.f32 %v132, %v691
  %v693 = vpop.f32.mrb[0].mxu0
  %v694 = vadd.f32 %v128, %v693
  %v695 = vpop.f32.mrb[0].mxu0
  %v696 = vadd.f32 %v132, %v695
  %697 = vmatprep.mubr.bf16.mxu0 %v252
  %698 = vmatmul.mubr.bf16.gmra.mrb[0].mxu0 %v251
  %v699 = vpop.f32.mrb[0].mxu0
  %v700 = vadd.f32 %v128, %v699
  %v701 = vpop.f32.mrb[0].mxu0
  %v702 = vadd.f32 %v132, %v701
  %v703 = vpop.f32.mrb[0].mxu0
  %v704 = vadd.f32 %v128, %v703
  %v705 = vpop.f32.mrb[0].mxu0
  %v706 = vadd.f32 %v132, %v705
  %707 = vmatprep.mubr.bf16.mxu0 %v256
  %708 = vmatmul.mubr.bf16.gmra.mrb[0].mxu0 %v255
  %v709 = vpop.f32.mrb[0].mxu0
  %v710 = vadd.f32 %v128, %v709
  %v711 = vpop.f32.mrb[0].mxu0
  %v712 = vadd.f32 %v132, %v711
  %v713 = vpop.f32.mrb[0].mxu0
  %v714 = vadd.f32 %v128, %v713
  %v715 = vpop.f32.mrb[0].mxu0
  %v716 = vadd.f32 %v132, %v715
  %717 = vmatprep.mubr.bf16.mxu0 %v260
  %718 = vmatmul.mubr.bf16.gmra.mrb[0].mxu0 %v259
  %v719 = vpop.f32.mrb[0].mxu0
  %v720 = vadd.f32 %v128, %v719
  %v721 = vpop.f32.mrb[0].mxu0
  %v722 = vadd.f32 %v132, %v721
  %v723 = vpop.f32.mrb[0].mxu0
  %v724 = vadd.f32 %v128, %v723
  %v725 = vpop.f32.mrb[0].mxu0
  %v726 = vadd.f32 %v132, %v725
  %727 = vdwg.mxu0
  %728 = vmatprep.subr.bf16.mxu0 %v520
  %729 = vmatpush1.bf16.msra.mxu0 %v519
  %730 = vmatprep.subr.bf16.mxu0 %v522
  %731 = vmatpush1.bf16.msra.mxu0 %v521
  %732 = vmatprep.subr.bf16.mxu0 %v524
  %733 = vmatpush1.bf16.msra.mxu0 %v523
  %734 = vmatprep.subr.bf16.mxu0 %v526
  %735 = vmatpush1.bf16.msra.mxu0 %v525
  %736 = vmatprep.subr.bf16.mxu0 %v528
  %737 = vmatpush1.bf16.msra.mxu0 %v527
  %738 = vmatprep.subr.bf16.mxu0 %v530
  %739 = vmatpush1.bf16.msra.mxu0 %v529
  %740 = vmatprep.subr.bf16.mxu0 %v532
  %741 = vmatpush1.bf16.msra.mxu0 %v531
  %742 = vmatprep.subr.bf16.mxu0 %v534
  %743 = vmatpush1.bf16.msra.mxu0 %v533
  %744 = vmatprep.subr.bf16.mxu0 %v536
  %745 = vmatpush1.bf16.msra.mxu0 %v535
  %746 = vmatprep.subr.bf16.mxu0 %v538
  %747 = vmatpush1.bf16.msra.mxu0 %v537
  %748 = vmatprep.subr.bf16.mxu0 %v540
  %749 = vmatpush1.bf16.msra.mxu0 %v539
  %750 = vmatprep.subr.bf16.mxu0 %v542
  %751 = vmatpush1.bf16.msra.mxu0 %v541
  %752 = vmatprep.subr.bf16.mxu0 %v544
  %753 = vmatpush1.bf16.msra.mxu0 %v543
  %754 = vmatprep.subr.bf16.mxu0 %v546
  %755 = vmatpush1.bf16.msra.mxu0 %v545
  %756 = vmatprep.subr.bf16.mxu0 %v548
  %757 = vmatpush1.bf16.msra.mxu0 %v547
  %758 = vmatprep.subr.bf16.mxu0 %v550
  %759 = vmatpush1.bf16.msra.mxu0 %v549
  %760 = vmatprep.mubr.bf16.mxu0 %v234
  %761 = vmatmul.mubr.bf16.gmra.mrb[0].mxu0 %v233
  %v762 = vpop.f32.mrb[0].mxu0
  %v763 = vadd.f32 %v650, %v762
  %v764 = vpop.f32.mrb[0].mxu0
  %v765 = vadd.f32 %v652, %v764
  %v766 = vpop.f32.mrb[0].mxu0
  %v767 = vadd.f32 %v654, %v766
  %v768 = vpop.f32.mrb[0].mxu0
  %v769 = vadd.f32 %v656, %v768
  %770 = vmatprep.mubr.bf16.mxu0 %v238
  %771 = vmatmul.mubr.bf16.gmra.mrb[0].mxu0 %v237
  %v772 = vpop.f32.mrb[0].mxu0
  %v773 = vadd.f32 %v660, %v772
  %v774 = vpop.f32.mrb[0].mxu0
  %v775 = vadd.f32 %v662, %v774
  %v776 = vpop.f32.mrb[0].mxu0
  %v777 = vadd.f32 %v664, %v776
  %v778 = vpop.f32.mrb[0].mxu0
  %v779 = vadd.f32 %v666, %v778
  %780 = vmatprep.mubr.bf16.mxu0 %v242
  %781 = vmatmul.mubr.bf16.gmra.mrb[0].mxu0 %v241
  %v782 = vpop.f32.mrb[0].mxu0
  %v783 = vadd.f32 %v670, %v782
  %v784 = vpop.f32.mrb[0].mxu0
  %v785 = vadd.f32 %v672, %v784
  %v786 = vpop.f32.mrb[0].mxu0
  %v787 = vadd.f32 %v674, %v786
  %v788 = vpop.f32.mrb[0].mxu0
  %v789 = vadd.f32 %v676, %v788
  %790 = vmatprep.mubr.bf16.mxu0 %v246
  %791 = vmatmul.mubr.bf16.gmra.mrb[0].mxu0 %v245
  %v792 = vpop.f32.mrb[0].mxu0
  %v793 = vadd.f32 %v680, %v792
  %v794 = vpop.f32.mrb[0].mxu0
  %v795 = vadd.f32 %v682, %v794
  %v796 = vpop.f32.mrb[0].mxu0
  %v797 = vadd.f32 %v684, %v796
  %v798 = vpop.f32.mrb[0].mxu0
  %v799 = vadd.f32 %v686, %v798
  %800 = vmatprep.mubr.bf16.mxu0 %v250
  %801 = vmatmul.mubr.bf16.gmra.mrb[0].mxu0 %v249
  %v802 = vpop.f32.mrb[0].mxu0
  %v803 = vadd.f32 %v690, %v802
  %v804 = vpop.f32.mrb[0].mxu0
  %v805 = vadd.f32 %v692, %v804
  %v806 = vpop.f32.mrb[0].mxu0
  %v807 = vadd.f32 %v694, %v806
  %v808 = vpop.f32.mrb[0].mxu0
  %v809 = vadd.f32 %v696, %v808
  %810 = vmatprep.mubr.bf16.mxu0 %v254
  %811 = vmatmul.mubr.bf16.gmra.mrb[0].mxu0 %v253
  %v812 = vpop.f32.mrb[0].mxu0
  %v813 = vadd.f32 %v700, %v812
  %v814 = vpop.f32.mrb[0].mxu0
  %v815 = vadd.f32 %v702, %v814
  %v816 = vpop.f32.mrb[0].mxu0
  %v817 = vadd.f32 %v704, %v816
  %v818 = vpop.f32.mrb[0].mxu0
  %v819 = vadd.f32 %v706, %v818
  %820 = vmatprep.mubr.bf16.mxu0 %v258
  %821 = vmatmul.mubr.bf16.gmra.mrb[0].mxu0 %v257
  %v822 = vpop.f32.mrb[0].mxu0
  %v823 = vadd.f32 %v710, %v822
  %v824 = vpop.f32.mrb[0].mxu0
  %v825 = vadd.f32 %v712, %v824
  %v826 = vpop.f32.mrb[0].mxu0
  %v827 = vadd.f32 %v714, %v826
  %v828 = vpop.f32.mrb[0].mxu0
  %v829 = vadd.f32 %v716, %v828
  %830 = vmatprep.mubr.bf16.mxu0 %v262
  %831 = vmatmul.mubr.bf16.gmra.mrb[0].mxu0 %v261
  %v832 = vpop.f32.mrb[0].mxu0
  %v833 = vadd.f32 %v720, %v832
  %v834 = vpop.f32.mrb[0].mxu0
  %v835 = vadd.f32 %v722, %v834
  %v836 = vpop.f32.mrb[0].mxu0
  %v837 = vadd.f32 %v724, %v836
  %v838 = vpop.f32.mrb[0].mxu0
  %v839 = vadd.f32 %v726, %v838
  %840 = vdwg.mxu0
  %v841 = vmax.f32 %v763, 0.0
  %v842 = vmax.f32 %v765, 0.0
  %v843 = vmax.f32 %v767, 0.0
  %v844 = vmax.f32 %v769, 0.0
  %v845 = vmax.f32 %v773, 0.0
  %v846 = vmax.f32 %v775, 0.0
  %v847 = vmax.f32 %v777, 0.0
  %v848 = vmax.f32 %v779, 0.0
  %v849 = vmax.f32 %v783, 0.0
  %v850 = vmax.f32 %v785, 0.0
  %v851 = vmax.f32 %v787, 0.0
  %v852 = vmax.f32 %v789, 0.0
  %v853 = vmax.f32 %v793, 0.0
  %v854 = vmax.f32 %v795, 0.0
  %v855 = vmax.f32 %v797, 0.0
  %v856 = vmax.f32 %v799, 0.0
  %v857 = vmax.f32 %v803, 0.0
  %v858 = vmax.f32 %v805, 0.0
  %v859 = vmax.f32 %v807, 0.0
  %v860 = vmax.f32 %v809, 0.0
  %v861 = vmax.f32 %v813, 0.0
  %v862 = vmax.f32 %v815, 0.0
  %v863 = vmax.f32 %v817, 0.0
  %v864 = vmax.f32 %v819, 0.0
  %v865 = vmax.f32 %v823, 0.0
  %v866 = vmax.f32 %v825, 0.0
  %v867 = vmax.f32 %v827, 0.0
  %v868 = vmax.f32 %v829, 0.0
  %v869 = vmax.f32 %v833, 0.0
  %v870 = vmax.f32 %v835, 0.0
  %v871 = vmax.f32 %v837, 0.0
  %v872 = vmax.f32 %v839, 0.0
  %v873 = vpack.c.bf16 %v843, %v841
  %v874 = vpack.c.bf16 %v844, %v842
  %v875 = vpack.c.bf16 %v847, %v845
  %v876 = vpack.c.bf16 %v848, %v846
  %v877 = vpack.c.bf16 %v851, %v849
  %v878 = vpack.c.bf16 %v852, %v850
  %v879 = vpack.c.bf16 %v855, %v853
  %v880 = vpack.c.bf16 %v856, %v854
  %v881 = vpack.c.bf16 %v859, %v857
  %v882 = vpack.c.bf16 %v860, %v858
  %v883 = vpack.c.bf16 %v863, %v861
  %v884 = vpack.c.bf16 %v864, %v862
  %v885 = vpack.c.bf16 %v867, %v865
  %v886 = vpack.c.bf16 %v868, %v866
  %v887 = vpack.c.bf16 %v871, %v869
  %v888 = vpack.c.bf16 %v872, %v870
  %v889 = vld [vmem:[%s3] sm:$0xff]
  %v890 = vld [vmem:[%s3 + $0x8] sm:$0xff]
  %v891 = vld [vmem:[%s3 + $0x10] sm:$0xff]
  %v892 = vld [vmem:[%s3 + $0x18] sm:$0xff]
  %v893 = vld [vmem:[%s3 + $0x20] sm:$0xff]
  %v894 = vld [vmem:[%s3 + $0x28] sm:$0xff]
  %v895 = vld [vmem:[%s3 + $0x30] sm:$0xff]
  %v896 = vld [vmem:[%s3 + $0x38] sm:$0xff]
  %v897 = vld [vmem:[%s3 + $0x40] sm:$0xff]
  %v898 = vld [vmem:[%s3 + $0x48] sm:$0xff]
  %v899 = vld [vmem:[%s3 + $0x50] sm:$0xff]
  %v900 = vld [vmem:[%s3 + $0x58] sm:$0xff]
  %v901 = vld [vmem:[%s3 + $0x60] sm:$0xff]
  %v902 = vld [vmem:[%s3 + $0x68] sm:$0xff]
  %v903 = vld [vmem:[%s3 + $0x70] sm:$0xff]
  %v904 = vld [vmem:[%s3 + $0x78] sm:$0xff]
  %v905 = vld [vmem:[%s3 + $0x80] sm:$0xff]
  %v906 = vld [vmem:[%s3 + $0x88] sm:$0xff]
  %v907 = vld [vmem:[%s3 + $0x90] sm:$0xff]
  %v908 = vld [vmem:[%s3 + $0x98] sm:$0xff]
  %v909 = vld [vmem:[%s3 + $0xa0] sm:$0xff]
  %v910 = vld [vmem:[%s3 + $0xa8] sm:$0xff]
  %v911 = vld [vmem:[%s3 + $0xb0] sm:$0xff]
  %v912 = vld [vmem:[%s3 + $0xb8] sm:$0xff]
  %v913 = vld [vmem:[%s3 + $0xc0] sm:$0xff]
  %v914 = vld [vmem:[%s3 + $0xc8] sm:$0xff]
  %v915 = vld [vmem:[%s3 + $0xd0] sm:$0xff]
  %v916 = vld [vmem:[%s3 + $0xd8] sm:$0xff]
  %v917 = vld [vmem:[%s3 + $0xe0] sm:$0xff]
  %v918 = vld [vmem:[%s3 + $0xe8] sm:$0xff]
  %v919 = vld [vmem:[%s3 + $0xf0] sm:$0xff]
  %v920 = vld [vmem:[%s3 + $0xf8] sm:$0xff]
  %v921 = vld [vmem:[%s4] sm:$0x3]
  %v923 = vlaneseq
  %v924 = vshrl.u32 %v923, 7
  %v925 = vsub.s32 0, %v924
  %v926 = vrot.slane %v921, %v925
  %v927 = vlaneseq
  %v928 = vshrl.u32 %v927, 7
  %v929 = vsub.s32 1, %v928
  %v930 = vrot.slane %v921, %v929
  %v965 = vunpack.c.l.b16 %v889
  %v966 = vunpack.c.h.b16 %v889
  %v967 = vunpack.c.l.b16 %v890
  %v968 = vunpack.c.h.b16 %v890
  %v969 = vunpack.c.l.b16 %v891
  %v970 = vunpack.c.h.b16 %v891
  %v971 = vunpack.c.l.b16 %v892
  %v972 = vunpack.c.h.b16 %v892
  %v973 = vunpack.c.l.b16 %v893
  %v974 = vunpack.c.h.b16 %v893
  %v975 = vunpack.c.l.b16 %v894
  %v976 = vunpack.c.h.b16 %v894
  %v977 = vunpack.c.l.b16 %v895
  %v978 = vunpack.c.h.b16 %v895
  %v979 = vunpack.c.l.b16 %v896
  %v980 = vunpack.c.h.b16 %v896
  %v981 = vunpack.c.l.b16 %v897
  %v982 = vunpack.c.h.b16 %v897
  %v983 = vunpack.c.l.b16 %v898
  %v984 = vunpack.c.h.b16 %v898
  %v985 = vunpack.c.l.b16 %v899
  %v986 = vunpack.c.h.b16 %v899
  %v987 = vunpack.c.l.b16 %v900
  %v988 = vunpack.c.h.b16 %v900
  %v989 = vunpack.c.l.b16 %v901
  %v990 = vunpack.c.h.b16 %v901
  %v991 = vunpack.c.l.b16 %v902
  %v992 = vunpack.c.h.b16 %v902
  %v993 = vunpack.c.l.b16 %v903
  %v994 = vunpack.c.h.b16 %v903
  %v995 = vunpack.c.l.b16 %v904
  %v996 = vunpack.c.h.b16 %v904
  %v997 = vunpack.c.l.b16 %v905
  %v998 = vunpack.c.h.b16 %v905
  %v999 = vunpack.c.l.b16 %v906
  %v1000 = vunpack.c.h.b16 %v906
  %v1001 = vunpack.c.l.b16 %v907
  %v1002 = vunpack.c.h.b16 %v907
  %v1003 = vunpack.c.l.b16 %v908
  %v1004 = vunpack.c.h.b16 %v908
  %v1005 = vunpack.c.l.b16 %v909
  %v1006 = vunpack.c.h.b16 %v909
  %v1007 = vunpack.c.l.b16 %v910
  %v1008 = vunpack.c.h.b16 %v910
  %v1009 = vunpack.c.l.b16 %v911
  %v1010 = vunpack.c.h.b16 %v911
  %v1011 = vunpack.c.l.b16 %v912
  %v1012 = vunpack.c.h.b16 %v912
  %v1013 = vunpack.c.l.b16 %v913
  %v1014 = vunpack.c.h.b16 %v913
  %v1015 = vunpack.c.l.b16 %v914
  %v1016 = vunpack.c.h.b16 %v914
  %v1017 = vunpack.c.l.b16 %v915
  %v1018 = vunpack.c.h.b16 %v915
  %v1019 = vunpack.c.l.b16 %v916
  %v1020 = vunpack.c.h.b16 %v916
  %v1021 = vunpack.c.l.b16 %v917
  %v1022 = vunpack.c.h.b16 %v917
  %v1023 = vunpack.c.l.b16 %v918
  %v1024 = vunpack.c.h.b16 %v918
  %v1025 = vunpack.c.l.b16 %v919
  %v1026 = vunpack.c.h.b16 %v919
  %v1027 = vunpack.c.l.b16 %v920
  %v1028 = vunpack.c.h.b16 %v920
  %v1029 = vpack.c.b16 %v967, %v965
  %v1030 = vpack.c.b16 %v968, %v966
  %v1031 = vpack.c.b16 %v971, %v969
  %v1032 = vpack.c.b16 %v972, %v970
  %v1033 = vpack.c.b16 %v975, %v973
  %v1034 = vpack.c.b16 %v976, %v974
  %v1035 = vpack.c.b16 %v979, %v977
  %v1036 = vpack.c.b16 %v980, %v978
  %v1037 = vpack.c.b16 %v983, %v981
  %v1038 = vpack.c.b16 %v984, %v982
  %v1039 = vpack.c.b16 %v987, %v985
  %v1040 = vpack.c.b16 %v988, %v986
  %v1041 = vpack.c.b16 %v991, %v989
  %v1042 = vpack.c.b16 %v992, %v990
  %v1043 = vpack.c.b16 %v995, %v993
  %v1044 = vpack.c.b16 %v996, %v994
  %v1045 = vpack.c.b16 %v999, %v997
  %v1046 = vpack.c.b16 %v1000, %v998
  %v1047 = vpack.c.b16 %v1003, %v1001
  %v1048 = vpack.c.b16 %v1004, %v1002
  %v1049 = vpack.c.b16 %v1007, %v1005
  %v1050 = vpack.c.b16 %v1008, %v1006
  %v1051 = vpack.c.b16 %v1011, %v1009
  %v1052 = vpack.c.b16 %v1012, %v1010
  %v1053 = vpack.c.b16 %v1015, %v1013
  %v1054 = vpack.c.b16 %v1016, %v1014
  %v1055 = vpack.c.b16 %v1019, %v1017
  %v1056 = vpack.c.b16 %v1020, %v1018
  %v1057 = vpack.c.b16 %v1023, %v1021
  %v1058 = vpack.c.b16 %v1024, %v1022
  %v1059 = vpack.c.b16 %v1027, %v1025
  %v1060 = vpack.c.b16 %v1028, %v1026
  %1093 = vmatprep.subr.bf16.mxu0 %v1030
  %1094 = vmatpush1.bf16.msra.mxu0 %v1029
  %1095 = vmatprep.subr.bf16.mxu0 %v1032
  %1096 = vmatpush1.bf16.msra.mxu0 %v1031
  %1097 = vmatprep.subr.bf16.mxu0 %v1034
  %1098 = vmatpush1.bf16.msra.mxu0 %v1033
  %1099 = vmatprep.subr.bf16.mxu0 %v1036
  %1100 = vmatpush1.bf16.msra.mxu0 %v1035
  %1101 = vmatprep.subr.bf16.mxu0 %v1038
  %1102 = vmatpush1.bf16.msra.mxu0 %v1037
  %1103 = vmatprep.subr.bf16.mxu0 %v1040
  %1104 = vmatpush1.bf16.msra.mxu0 %v1039
  %1105 = vmatprep.subr.bf16.mxu0 %v1042
  %1106 = vmatpush1.bf16.msra.mxu0 %v1041
  %1107 = vmatprep.subr.bf16.mxu0 %v1044
  %1108 = vmatpush1.bf16.msra.mxu0 %v1043
  %1109 = vmatprep.subr.bf16.mxu0 %v1046
  %1110 = vmatpush1.bf16.msra.mxu0 %v1045
  %1111 = vmatprep.subr.bf16.mxu0 %v1048
  %1112 = vmatpush1.bf16.msra.mxu0 %v1047
  %1113 = vmatprep.subr.bf16.mxu0 %v1050
  %1114 = vmatpush1.bf16.msra.mxu0 %v1049
  %1115 = vmatprep.subr.bf16.mxu0 %v1052
  %1116 = vmatpush1.bf16.msra.mxu0 %v1051
  %1117 = vmatprep.subr.bf16.mxu0 %v1054
  %1118 = vmatpush1.bf16.msra.mxu0 %v1053
  %1119 = vmatprep.subr.bf16.mxu0 %v1056
  %1120 = vmatpush1.bf16.msra.mxu0 %v1055
  %1121 = vmatprep.subr.bf16.mxu0 %v1058
  %1122 = vmatpush1.bf16.msra.mxu0 %v1057
  %1123 = vmatprep.subr.bf16.mxu0 %v1060
  %1124 = vmatpush1.bf16.msra.mxu0 %v1059
  %1125 = vmatprep.mubr.bf16.mxu0 %v874
  %1126 = vmatmul.mubr.bf16.gmra.mrb[0].mxu0 %v873
  %v1127 = vpop.f32.mrb[0].mxu0
  %v1128 = vadd.f32 %v926, %v1127
  %v1129 = vpop.f32.mrb[0].mxu0
  %v1130 = vadd.f32 %v930, %v1129
  %v1131 = vpop.f32.mrb[0].mxu0
  %v1132 = vadd.f32 %v926, %v1131
  %v1133 = vpop.f32.mrb[0].mxu0
  %v1134 = vadd.f32 %v930, %v1133
  %1135 = vmatprep.mubr.bf16.mxu0 %v876
  %1136 = vmatmul.mubr.bf16.gmra.mrb[0].mxu0 %v875
  %v1137 = vpop.f32.mrb[0].mxu0
  %v1138 = vadd.f32 %v926, %v1137
  %v1139 = vpop.f32.mrb[0].mxu0
  %v1140 = vadd.f32 %v930, %v1139
  %v1141 = vpop.f32.mrb[0].mxu0
  %v1142 = vadd.f32 %v926, %v1141
  %v1143 = vpop.f32.mrb[0].mxu0
  %v1144 = vadd.f32 %v930, %v1143
  %1145 = vmatprep.mubr.bf16.mxu0 %v878
  %1146 = vmatmul.mubr.bf16.gmra.mrb[0].mxu0 %v877
  %v1147 = vpop.f32.mrb[0].mxu0
  %v1148 = vadd.f32 %v926, %v1147
  %v1149 = vpop.f32.mrb[0].mxu0
  %v1150 = vadd.f32 %v930, %v1149
  %v1151 = vpop.f32.mrb[0].mxu0
  %v1152 = vadd.f32 %v926, %v1151
  %v1153 = vpop.f32.mrb[0].mxu0
  %v1154 = vadd.f32 %v930, %v1153
  %1155 = vmatprep.mubr.bf16.mxu0 %v880
  %1156 = vmatmul.mubr.bf16.gmra.mrb[0].mxu0 %v879
  %v1157 = vpop.f32.mrb[0].mxu0
  %v1158 = vadd.f32 %v926, %v1157
  %v1159 = vpop.f32.mrb[0].mxu0
  %v1160 = vadd.f32 %v930, %v1159
  %v1161 = vpop.f32.mrb[0].mxu0
  %v1162 = vadd.f32 %v926, %v1161
  %v1163 = vpop.f32.mrb[0].mxu0
  %v1164 = vadd.f32 %v930, %v1163
  %1165 = vmatprep.mubr.bf16.mxu0 %v882
  %1166 = vmatmul.mubr.bf16.gmra.mrb[0].mxu0 %v881
  %v1167 = vpop.f32.mrb[0].mxu0
  %v1168 = vadd.f32 %v926, %v1167
  %v1169 = vpop.f32.mrb[0].mxu0
  %v1170 = vadd.f32 %v930, %v1169
  %v1171 = vpop.f32.mrb[0].mxu0
  %v1172 = vadd.f32 %v926, %v1171
  %v1173 = vpop.f32.mrb[0].mxu0
  %v1174 = vadd.f32 %v930, %v1173
  %1175 = vmatprep.mubr.bf16.mxu0 %v884
  %1176 = vmatmul.mubr.bf16.gmra.mrb[0].mxu0 %v883
  %v1177 = vpop.f32.mrb[0].mxu0
  %v1178 = vadd.f32 %v926, %v1177
  %v1179 = vpop.f32.mrb[0].mxu0
  %v1180 = vadd.f32 %v930, %v1179
  %v1181 = vpop.f32.mrb[0].mxu0
  %v1182 = vadd.f32 %v926, %v1181
  %v1183 = vpop.f32.mrb[0].mxu0
  %v1184 = vadd.f32 %v930, %v1183
  %1185 = vmatprep.mubr.bf16.mxu0 %v886
  %1186 = vmatmul.mubr.bf16.gmra.mrb[0].mxu0 %v885
  %v1187 = vpop.f32.mrb[0].mxu0
  %v1188 = vadd.f32 %v926, %v1187
  %v1189 = vpop.f32.mrb[0].mxu0
  %v1190 = vadd.f32 %v930, %v1189
  %v1191 = vpop.f32.mrb[0].mxu0
  %v1192 = vadd.f32 %v926, %v1191
  %v1193 = vpop.f32.mrb[0].mxu0
  %v1194 = vadd.f32 %v930, %v1193
  %1195 = vmatprep.mubr.bf16.mxu0 %v888
  %1196 = vmatmul.mubr.bf16.gmra.mrb[0].mxu0 %v887
  %v1197 = vpop.f32.mrb[0].mxu0
  %v1198 = vadd.f32 %v926, %v1197
  %v1199 = vpop.f32.mrb[0].mxu0
  %v1200 = vadd.f32 %v930, %v1199
  %v1201 = vpop.f32.mrb[0].mxu0
  %v1202 = vadd.f32 %v926, %v1201
  %v1203 = vpop.f32.mrb[0].mxu0
  %v1204 = vadd.f32 %v930, %v1203
  %1205 = vdwg.mxu0
  %v1206 = vmax.f32 %v1128, 0.0
  %v1207 = vmax.f32 %v1130, 0.0
  %v1208 = vmax.f32 %v1132, 0.0
  %v1209 = vmax.f32 %v1134, 0.0
  %v1210 = vmax.f32 %v1138, 0.0
  %v1211 = vmax.f32 %v1140, 0.0
  %v1212 = vmax.f32 %v1142, 0.0
  %v1213 = vmax.f32 %v1144, 0.0
  %v1214 = vmax.f32 %v1148, 0.0
  %v1215 = vmax.f32 %v1150, 0.0
  %v1216 = vmax.f32 %v1152, 0.0
  %v1217 = vmax.f32 %v1154, 0.0
  %v1218 = vmax.f32 %v1158, 0.0
  %v1219 = vmax.f32 %v1160, 0.0
  %v1220 = vmax.f32 %v1162, 0.0
  %v1221 = vmax.f32 %v1164, 0.0
  %v1222 = vmax.f32 %v1168, 0.0
  %v1223 = vmax.f32 %v1170, 0.0
  %v1224 = vmax.f32 %v1172, 0.0
  %v1225 = vmax.f32 %v1174, 0.0
  %v1226 = vmax.f32 %v1178, 0.0
  %v1227 = vmax.f32 %v1180, 0.0
  %v1228 = vmax.f32 %v1182, 0.0
  %v1229 = vmax.f32 %v1184, 0.0
  %v1230 = vmax.f32 %v1188, 0.0
  %v1231 = vmax.f32 %v1190, 0.0
  %v1232 = vmax.f32 %v1192, 0.0
  %v1233 = vmax.f32 %v1194, 0.0
  %v1234 = vmax.f32 %v1198, 0.0
  %v1235 = vmax.f32 %v1200, 0.0
  %v1236 = vmax.f32 %v1202, 0.0
  %v1237 = vmax.f32 %v1204, 0.0
  %v1238 = vpack.c.bf16 %v1208, %v1206
  %v1239 = vpack.c.bf16 %v1209, %v1207
  %v1240 = vpack.c.bf16 %v1212, %v1210
  %v1241 = vpack.c.bf16 %v1213, %v1211
  %v1242 = vpack.c.bf16 %v1216, %v1214
  %v1243 = vpack.c.bf16 %v1217, %v1215
  %v1244 = vpack.c.bf16 %v1220, %v1218
  %v1245 = vpack.c.bf16 %v1221, %v1219
  %v1246 = vpack.c.bf16 %v1224, %v1222
  %v1247 = vpack.c.bf16 %v1225, %v1223
  %v1248 = vpack.c.bf16 %v1228, %v1226
  %v1249 = vpack.c.bf16 %v1229, %v1227
  %v1250 = vpack.c.bf16 %v1232, %v1230
  %v1251 = vpack.c.bf16 %v1233, %v1231
  %v1252 = vpack.c.bf16 %v1236, %v1234
  %v1253 = vpack.c.bf16 %v1237, %v1235
  %v1254 = vld [vmem:[%s5] sm:$0xf]
  %v1255 = vld [vmem:[%s5 + $0x4] sm:$0xf]
  %v1256 = vld [vmem:[%s5 + $0x8] sm:$0xf]
  %v1257 = vld [vmem:[%s5 + $0xc] sm:$0xf]
  %v1258 = vld [vmem:[%s5 + $0x10] sm:$0xf]
  %v1259 = vld [vmem:[%s5 + $0x14] sm:$0xf]
  %v1260 = vld [vmem:[%s5 + $0x18] sm:$0xf]
  %v1261 = vld [vmem:[%s5 + $0x1c] sm:$0xf]
  %v1262 = vld [vmem:[%s5 + $0x20] sm:$0xf]
  %v1263 = vld [vmem:[%s5 + $0x24] sm:$0xf]
  %v1264 = vld [vmem:[%s5 + $0x28] sm:$0xf]
  %v1265 = vld [vmem:[%s5 + $0x2c] sm:$0xf]
  %v1266 = vld [vmem:[%s5 + $0x30] sm:$0xf]
  %v1267 = vld [vmem:[%s5 + $0x34] sm:$0xf]
  %v1268 = vld [vmem:[%s5 + $0x38] sm:$0xf]
  %v1269 = vld [vmem:[%s5 + $0x3c] sm:$0xf]
  %v1270 = vld [vmem:[%s5 + $0x40] sm:$0xf]
  %v1271 = vld [vmem:[%s5 + $0x44] sm:$0xf]
  %v1272 = vld [vmem:[%s5 + $0x48] sm:$0xf]
  %v1273 = vld [vmem:[%s5 + $0x4c] sm:$0xf]
  %v1274 = vld [vmem:[%s5 + $0x50] sm:$0xf]
  %v1275 = vld [vmem:[%s5 + $0x54] sm:$0xf]
  %v1276 = vld [vmem:[%s5 + $0x58] sm:$0xf]
  %v1277 = vld [vmem:[%s5 + $0x5c] sm:$0xf]
  %v1278 = vld [vmem:[%s5 + $0x60] sm:$0xf]
  %v1279 = vld [vmem:[%s5 + $0x64] sm:$0xf]
  %v1280 = vld [vmem:[%s5 + $0x68] sm:$0xf]
  %v1281 = vld [vmem:[%s5 + $0x6c] sm:$0xf]
  %v1282 = vld [vmem:[%s5 + $0x70] sm:$0xf]
  %v1283 = vld [vmem:[%s5 + $0x74] sm:$0xf]
  %v1284 = vld [vmem:[%s5 + $0x78] sm:$0xf]
  %v1285 = vld [vmem:[%s5 + $0x7c] sm:$0xf]
  %v1286 = vld [vmem:[%s6] sm:$0x1]
  %v1288 = vlaneseq
  %v1289 = vshrl.u32 %v1288, 7
  %v1290 = vsub.s32 0, %v1289
  %v1291 = vrot.slane %v1286, %v1290
  %v1325 = vunpack.c.l.b16 %v1254
  %v1326 = vunpack.c.l.b16 %v1255
  %v1327 = vunpack.c.l.b16 %v1256
  %v1328 = vunpack.c.l.b16 %v1257
  %v1329 = vunpack.c.l.b16 %v1258
  %v1330 = vunpack.c.l.b16 %v1259
  %v1331 = vunpack.c.l.b16 %v1260
  %v1332 = vunpack.c.l.b16 %v1261
  %v1333 = vunpack.c.l.b16 %v1262
  %v1334 = vunpack.c.l.b16 %v1263
  %v1335 = vunpack.c.l.b16 %v1264
  %v1336 = vunpack.c.l.b16 %v1265
  %v1337 = vunpack.c.l.b16 %v1266
  %v1338 = vunpack.c.l.b16 %v1267
  %v1339 = vunpack.c.l.b16 %v1268
  %v1340 = vunpack.c.l.b16 %v1269
  %v1341 = vunpack.c.l.b16 %v1270
  %v1342 = vunpack.c.l.b16 %v1271
  %v1343 = vunpack.c.l.b16 %v1272
  %v1344 = vunpack.c.l.b16 %v1273
  %v1345 = vunpack.c.l.b16 %v1274
  %v1346 = vunpack.c.l.b16 %v1275
  %v1347 = vunpack.c.l.b16 %v1276
  %v1348 = vunpack.c.l.b16 %v1277
  %v1349 = vunpack.c.l.b16 %v1278
  %v1350 = vunpack.c.l.b16 %v1279
  %v1351 = vunpack.c.l.b16 %v1280
  %v1352 = vunpack.c.l.b16 %v1281
  %v1353 = vunpack.c.l.b16 %v1282
  %v1354 = vunpack.c.l.b16 %v1283
  %v1355 = vunpack.c.l.b16 %v1284
  %v1356 = vunpack.c.l.b16 %v1285
  %v1357 = vpack.c.b16 %v1326, %v1325
  %v1358 = vpack.c.b16 %v1328, %v1327
  %v1359 = vpack.c.b16 %v1330, %v1329
  %v1360 = vpack.c.b16 %v1332, %v1331
  %v1361 = vpack.c.b16 %v1334, %v1333
  %v1362 = vpack.c.b16 %v1336, %v1335
  %v1363 = vpack.c.b16 %v1338, %v1337
  %v1364 = vpack.c.b16 %v1340, %v1339
  %v1365 = vpack.c.b16 %v1342, %v1341
  %v1366 = vpack.c.b16 %v1344, %v1343
  %v1367 = vpack.c.b16 %v1346, %v1345
  %v1368 = vpack.c.b16 %v1348, %v1347
  %v1369 = vpack.c.b16 %v1350, %v1349
  %v1370 = vpack.c.b16 %v1352, %v1351
  %v1371 = vpack.c.b16 %v1354, %v1353
  %v1372 = vpack.c.b16 %v1356, %v1355
  %1389 = vmatprep.subr.bf16.mxu0 0
  %1390 = vmatpush1.bf16.msra.mxu0 %v1357
  %1391 = vmatprep.subr.bf16.mxu0 0
  %1392 = vmatpush1.bf16.msra.mxu0 %v1358
  %1393 = vmatprep.subr.bf16.mxu0 0
  %1394 = vmatpush1.bf16.msra.mxu0 %v1359
  %1395 = vmatprep.subr.bf16.mxu0 0
  %1396 = vmatpush1.bf16.msra.mxu0 %v1360
  %1397 = vmatprep.subr.bf16.mxu0 0
  %1398 = vmatpush1.bf16.msra.mxu0 %v1361
  %1399 = vmatprep.subr.bf16.mxu0 0
  %1400 = vmatpush1.bf16.msra.mxu0 %v1362
  %1401 = vmatprep.subr.bf16.mxu0 0
  %1402 = vmatpush1.bf16.msra.mxu0 %v1363
  %1403 = vmatprep.subr.bf16.mxu0 0
  %1404 = vmatpush1.bf16.msra.mxu0 %v1364
  %1405 = vmatprep.subr.bf16.mxu0 0
  %1406 = vmatpush1.bf16.msra.mxu0 %v1365
  %1407 = vmatprep.subr.bf16.mxu0 0
  %1408 = vmatpush1.bf16.msra.mxu0 %v1366
  %1409 = vmatprep.subr.bf16.mxu0 0
  %1410 = vmatpush1.bf16.msra.mxu0 %v1367
  %1411 = vmatprep.subr.bf16.mxu0 0
  %1412 = vmatpush1.bf16.msra.mxu0 %v1368
  %1413 = vmatprep.subr.bf16.mxu0 0
  %1414 = vmatpush1.bf16.msra.mxu0 %v1369
  %1415 = vmatprep.subr.bf16.mxu0 0
  %1416 = vmatpush1.bf16.msra.mxu0 %v1370
  %1417 = vmatprep.subr.bf16.mxu0 0
  %1418 = vmatpush1.bf16.msra.mxu0 %v1371
  %1419 = vmatprep.subr.bf16.mxu0 0
  %1420 = vmatpush1.bf16.msra.mxu0 %v1372
  %1421 = vmatprep.mubr.bf16.mxu0 %v1239
  %1422 = vmatmul.mubr.bf16.gmra.mrb[0].mxu0 %v1238
  %v1423 = vpop.f32.mrb[0].mxu0
  %v1424 = vadd.f32 %v1291, %v1423
  %v1425 = vpop.f32.mrb[0].mxu0
  %v1426 = vpop.f32.mrb[0].mxu0
  %v1427 = vadd.f32 %v1291, %v1426
  %v1428 = vpop.f32.mrb[0].mxu0
  %1429 = vmatprep.mubr.bf16.mxu0 %v1241
  %1430 = vmatmul.mubr.bf16.gmra.mrb[0].mxu0 %v1240
  %v1431 = vpop.f32.mrb[0].mxu0
  %v1432 = vadd.f32 %v1291, %v1431
  %v1433 = vpop.f32.mrb[0].mxu0
  %v1434 = vpop.f32.mrb[0].mxu0
  %v1435 = vadd.f32 %v1291, %v1434
  %v1436 = vpop.f32.mrb[0].mxu0
  %1437 = vmatprep.mubr.bf16.mxu0 %v1243
  %1438 = vmatmul.mubr.bf16.gmra.mrb[0].mxu0 %v1242
  %v1439 = vpop.f32.mrb[0].mxu0
  %v1440 = vadd.f32 %v1291, %v1439
  %v1441 = vpop.f32.mrb[0].mxu0
  %v1442 = vpop.f32.mrb[0].mxu0
  %v1443 = vadd.f32 %v1291, %v1442
  %v1444 = vpop.f32.mrb[0].mxu0
  %1445 = vmatprep.mubr.bf16.mxu0 %v1245
  %1446 = vmatmul.mubr.bf16.gmra.mrb[0].mxu0 %v1244
  %v1447 = vpop.f32.mrb[0].mxu0
  %v1448 = vadd.f32 %v1291, %v1447
  %v1449 = vpop.f32.mrb[0].mxu0
  %v1450 = vpop.f32.mrb[0].mxu0
  %v1451 = vadd.f32 %v1291, %v1450
  %v1452 = vpop.f32.mrb[0].mxu0
  %1453 = vmatprep.mubr.bf16.mxu0 %v1247
  %1454 = vmatmul.mubr.bf16.gmra.mrb[0].mxu0 %v1246
  %v1455 = vpop.f32.mrb[0].mxu0
  %v1456 = vadd.f32 %v1291, %v1455
  %v1457 = vpop.f32.mrb[0].mxu0
  %v1458 = vpop.f32.mrb[0].mxu0
  %v1459 = vadd.f32 %v1291, %v1458
  %v1460 = vpop.f32.mrb[0].mxu0
  %1461 = vmatprep.mubr.bf16.mxu0 %v1249
  %1462 = vmatmul.mubr.bf16.gmra.mrb[0].mxu0 %v1248
  %v1463 = vpop.f32.mrb[0].mxu0
  %v1464 = vadd.f32 %v1291, %v1463
  %v1465 = vpop.f32.mrb[0].mxu0
  %v1466 = vpop.f32.mrb[0].mxu0
  %v1467 = vadd.f32 %v1291, %v1466
  %v1468 = vpop.f32.mrb[0].mxu0
  %1469 = vmatprep.mubr.bf16.mxu0 %v1251
  %1470 = vmatmul.mubr.bf16.gmra.mrb[0].mxu0 %v1250
  %v1471 = vpop.f32.mrb[0].mxu0
  %v1472 = vadd.f32 %v1291, %v1471
  %v1473 = vpop.f32.mrb[0].mxu0
  %v1474 = vpop.f32.mrb[0].mxu0
  %v1475 = vadd.f32 %v1291, %v1474
  %v1476 = vpop.f32.mrb[0].mxu0
  %1477 = vmatprep.mubr.bf16.mxu0 %v1253
  %1478 = vmatmul.mubr.bf16.gmra.mrb[0].mxu0 %v1252
  %v1479 = vpop.f32.mrb[0].mxu0
  %v1480 = vadd.f32 %v1291, %v1479
  %v1481 = vpop.f32.mrb[0].mxu0
  %v1482 = vpop.f32.mrb[0].mxu0
  %v1483 = vadd.f32 %v1291, %v1482
  %v1484 = vpop.f32.mrb[0].mxu0
  %1485 = vdwg.mxu0
  %1486 = vst [vmem:[%s7] sm:$0xff] %v1424
  %1487 = vst [vmem:[%s7 + $0x8] sm:$0xff] %v1427
  %1488 = vst [vmem:[%s7 + $0x10] sm:$0xff] %v1432
  %1489 = vst [vmem:[%s7 + $0x18] sm:$0xff] %v1435
  %1490 = vst [vmem:[%s7 + $0x20] sm:$0xff] %v1440
  %1491 = vst [vmem:[%s7 + $0x28] sm:$0xff] %v1443
  %1492 = vst [vmem:[%s7 + $0x30] sm:$0xff] %v1448
  %1493 = vst [vmem:[%s7 + $0x38] sm:$0xff] %v1451
  %1494 = vst [vmem:[%s7 + $0x40] sm:$0xff] %v1456
  %1495 = vst [vmem:[%s7 + $0x48] sm:$0xff] %v1459
  %1496 = vst [vmem:[%s7 + $0x50] sm:$0xff] %v1464
  %1497 = vst [vmem:[%s7 + $0x58] sm:$0xff] %v1467
  %1498 = vst [vmem:[%s7 + $0x60] sm:$0xff] %v1472
  %1499 = vst [vmem:[%s7 + $0x68] sm:$0xff] %v1475
  %1500 = vst [vmem:[%s7 + $0x70] sm:$0xff] %v1480
  %1501 = vst [vmem:[%s7 + $0x78] sm:$0xff] %v1483
  // Predicated region
  $region30: #{md_dnn_forward.1} parent=0 // pred_check
    _
  $region31: #{md_dnn_forward.1} parent=0 // pred_check_branch
    %1503 = sbr.rel (0) target = $region33
  $region32: #{md_dnn_forward.1} parent=0 // pred_region
    _
  $region33: #{md_dnn_forward.1} parent=0 // pred_fallthru
    _
  // Predicated region
  $region34: #{md_dnn_forward.1} parent=0 // pred_check
    _
  $region35: #{md_dnn_forward.1} parent=0 // pred_check_branch
    %1505 = sbr.rel (0) target = $region37
  $region36: #{md_dnn_forward.1} parent=0 // pred_region
    _
  $region37: #{md_dnn_forward.1} parent=0 // pred_fallthru
    _

</llo_original>
